<compile_context>
chip_gen: v5e
topology: v5e:2x2
jax: 0.10.0
libtpu: 0.0.40
codegen_flags: <defaults>
</compile_context>

<pallas_src>
import functools

import jax
import jax.numpy as jnp
from jax.experimental import pallas as pl
from jax.experimental.pallas import tpu as pltpu

LANE = 128          # TPU lane width (last-dim tiling)
SUBLANE = 8         # f32 sublane count (second-to-last-dim tiling)
ACC_ROWS_MAX = 512  # accumulator rows: (512, 128) f32 = 256 KiB, independent of TM


def _round_up(x: int, m: int) -> int:
    return ((x + m - 1) // m) * m


def _chip_defaults():
    """(ncores, max_tm) tuned per TPU generation; conservative if unknown."""
    kind = ""
    try:
        kind = jax.devices()[0].device_kind.lower()
    except Exception:
        pass
    if ("v7" in kind) or ("7x" in kind) or ("tpu7" in kind):
        return 2, 8192     # 2 TensorCores/chip, ~3.2 TB/s HBM per TC -> big tiles
    if ("v6" in kind) or ("trillium" in kind):
        return 1, 4096     # 1 TC, ~1.4 TB/s HBM
    return 1, 2048         # v5e / older / unknown (16 MiB scoped-VMEM default)


def _mse_body_kernel(v_ref, e_ref, o_ref, acc_ref, *, inv_n, rows, acc_rows,
                     steps_per_core, masked):
    """Streaming sum((e - v)^2) * inv_n into a small VMEM vector accumulator.

    v_ref, e_ref : (TM, 128) input tiles (cast to f32 in-kernel)
    o_ref        : (1, 8, 128) per-core partial-sum block (already scaled by 1/N)
    acc_ref      : (acc_rows, 128) f32 accumulator, persists across the grid
    """
    c = pl.program_id(0)
    i = pl.program_id(1)
    tm = v_ref.shape[0]

    @pl.when(i == 0)
    def _():
        acc_ref[...] = jnp.zeros_like(acc_ref)

    d = e_ref[...].astype(jnp.float32) - v_ref[...].astype(jnp.float32)
    sq = d * d
    if masked:
        # Zero contributions from rows past the true extent (edge overhang and
        # clamped fully-out-of-range blocks).  Use jnp.where (a select, not a
        # multiply) so garbage inf/nan in the overhang cannot leak into the sum.
        blk = c * steps_per_core + i
        row_idx = blk * tm + jax.lax.broadcasted_iota(jnp.int32, (tm, LANE), 0)
        sq = jnp.where(row_idx < rows, sq, 0.0)

    # Fold the (TM, 128) tile into the small accumulator with static,
    # sublane-aligned slices (pure VPU adds; overlaps the next tile's DMA).
    for j in range(tm // acc_rows):
        acc_ref[...] += sq[j * acc_rows:(j + 1) * acc_rows, :]

    @pl.when(i == pl.num_programs(1) - 1)
    def _():
        # One final VPU-only reduce down to a lane-aligned (8, 128) partial
        # block; fold the 1/N into the store.
        part = acc_ref[...].reshape(acc_rows // SUBLANE, SUBLANE, LANE).sum(axis=0)
        o_ref[0] = part * inv_n


def _mse_body_sum_scaled(v2, e2, rows, inv_n):
    """Run the Pallas kernel over a (rows, 128) body; returns sum(sq) * inv_n."""
    ncores, max_tm = _chip_defaults()

    # At most one partial tile per core (no NCORES*TM round-up of streamed
    # bytes), then align TM to the accumulator granularity.
    tm = min(max_tm, _round_up(pl.cdiv(rows, ncores), SUBLANE))
    acc_rows = min(ACC_ROWS_MAX, tm)
    if tm > acc_rows:
        tm = _round_up(tm, acc_rows)

    blocks = pl.cdiv(rows, tm)
    steps_per_core = pl.cdiv(blocks, ncores)
    total_blocks = ncores * steps_per_core
    masked = (total_blocks * tm) != rows

    # Clamp block indices so a core with no real work re-reads the last valid
    # block (a cheap, in-bounds DMA); its contribution is zeroed by the mask.
    def in_idx(c, i):
        return (jnp.minimum(c * steps_per_core + i, blocks - 1), 0)

    kernel = functools.partial(
        _mse_body_kernel, inv_n=inv_n, rows=rows, acc_rows=acc_rows,
        steps_per_core=steps_per_core, masked=masked)

    parts = pl.pallas_call(
        kernel,
        out_shape=jax.ShapeDtypeStruct((ncores, SUBLANE, LANE), jnp.float32),
        grid_spec=pltpu.PrefetchScalarGridSpec(
            num_scalar_prefetch=0,
            grid=(ncores, steps_per_core),
            in_specs=[
                pl.BlockSpec((tm, LANE), in_idx),
                pl.BlockSpec((tm, LANE), in_idx),
            ],
            out_specs=pl.BlockSpec((1, SUBLANE, LANE), lambda c, i: (c, 0, 0)),
            scratch_shapes=[pltpu.VMEM((acc_rows, LANE), jnp.float32)],
        ),
        compiler_params=pltpu.CompilerParams(
            dimension_semantics=("parallel", "arbitrary"),
        ),
    )(v2, e2)

    # Each per-core block is already scaled by 1/N, so the sum is the mean.
    return jnp.sum(parts)


def critic_loss(value: jax.Array, estimate_value: jax.Array,
                *, min_pallas_elems: int = 32768) -> jax.Array:
    """Pallas equivalent of Critic_Loss().forward(value, estimate_value)."""
    # Stricter than torch (which broadcasts with a warning); behavioral only.
    assert value.shape == estimate_value.shape, "mse_loss expects matching shapes"
    n = int(value.size)
    if n == 0:
        return jnp.array(jnp.nan, dtype=jnp.float32)   # torch: mean of empty -> nan

    v = value.reshape(-1)
    e = estimate_value.reshape(-1)
    rows = n // LANE            # full 128-element rows
    tail = n - rows * LANE      # < 128 ragged elements

    if n < min_pallas_elems or rows == 0:
        # Tiny input: pallas_call fixed cost dwarfs the actual HBM traffic.
        d = e.astype(jnp.float32) - v.astype(jnp.float32)
        return jnp.mean(d * d)

    inv_n = 1.0 / n

    if tail == 0:
        # Zero-copy path: reshaping a contiguous array whose size is a multiple
        # of 128 is a pure bitcast (covers the (B, 128) critic shape).
        loss = _mse_body_sum_scaled(v.reshape(rows, LANE), e.reshape(rows, LANE),
                                    rows, inv_n)
    else:
        # Lane-ragged input: kernel handles the aligned body, wrapper reduces
        # the < 128-element tail.
        # TODO(synk): XLA may materialize the body prefix slice as a copy; a
        # fully copy-free ragged path would need a manual-DMA (pl.ANY) kernel.
        v2 = v[:rows * LANE].reshape(rows, LANE)
        e2 = e[:rows * LANE].reshape(rows, LANE)
        dt = (e[rows * LANE:].astype(jnp.float32)
              - v[rows * LANE:].astype(jnp.float32))
        loss = _mse_body_sum_scaled(v2, e2, rows, inv_n) + jnp.sum(dt * dt) * inv_n

    return loss


if __name__ == "__main__":
    key = jax.random.PRNGKey(0)
    k1, k2 = jax.random.split(key)

    # Small RL-critic-like shapes: batch of 16 rollout steps, 128 value lanes.
    # Force the Pallas path even though this is tiny (exercises the kernel).
    value = jax.random.normal(k1, (16, 128), dtype=jnp.float32)
    estimate_value = jax.random.normal(k2, (16, 128), dtype=jnp.float32)
    loss = jax.block_until_ready(
        critic_loss(value, estimate_value, min_pallas_elems=0))
    ref = jnp.mean((estimate_value - value) ** 2)
    assert jnp.allclose(loss, ref, rtol=1e-5, atol=1e-6), (loss, ref)

    # Ragged shape (exercises in-kernel row masking + the wrapper lane tail).
    v3 = jax.random.normal(k1, (12, 37), dtype=jnp.float32)
    e3 = jax.random.normal(k2, (12, 37), dtype=jnp.float32)
    loss3 = jax.block_until_ready(critic_loss(v3, e3, min_pallas_elems=0))
    ref3 = jnp.mean((e3 - v3) ** 2)
    assert jnp.allclose(loss3, ref3, rtol=1e-5, atol=1e-6), (loss3, ref3)

    # Default-threshold Pallas path (zero-copy lane-aligned body, masked rows).
    v4 = jax.random.normal(k1, (300, 128), dtype=jnp.float32)
    e4 = jax.random.normal(k2, (300, 128), dtype=jnp.float32)
    loss4 = jax.block_until_ready(critic_loss(v4, e4))
    ref4 = jnp.mean((e4 - v4) ** 2)
    assert jnp.allclose(loss4, ref4, rtol=1e-5, atol=1e-6), (loss4, ref4)

    # Tiny-input fallback path.
    v5 = jax.random.normal(k1, (7,), dtype=jnp.float32)
    e5 = jax.random.normal(k2, (7,), dtype=jnp.float32)
    loss5 = jax.block_until_ready(critic_loss(v5, e5))
    ref5 = jnp.mean((e5 - v5) ** 2)
    assert jnp.allclose(loss5, ref5, rtol=1e-5, atol=1e-6), (loss5, ref5)

    print("KERNEL_OK")
</pallas_src>

<mosaic_0001>
module attributes {stable_mosaic.version = 11 : i64} {
  func.func @_mse_body_kernel(%arg0: i32, %arg1: i32, %arg2: memref<16x128xf32, #tpu.memory_space<vmem>>, %arg3: memref<16x128xf32, #tpu.memory_space<vmem>>, %arg4: memref<1x8x128xf32, #tpu.memory_space<vmem>>, %arg5: memref<16x128xf32, #tpu.memory_space<vmem>>) attributes {dimension_semantics = [#tpu.dimension_semantics<parallel>, #tpu.dimension_semantics<arbitrary>], iteration_bounds = array<i64: 1, 1>, scalar_prefetch = 0 : i64, scratch_operands = 1 : i64, tpu.core_type = #tpu.core_type<tc>, window_params = [{transform_indices = @transform_0, window_bounds = array<i64: 16, 128>}, {transform_indices = @transform_1, window_bounds = array<i64: 16, 128>}, {transform_indices = @transform_2, window_bounds = array<i64: 1, 8, 128>}]} {
    %c0_i32 = arith.constant 0 : i32
    %0 = arith.cmpi eq, %arg1, %c0_i32 : i32
    %1 = arith.extui %0 : i1 to i32
    %c0_i32_0 = arith.constant 0 : i32
    %2 = arith.cmpi ne, %1, %c0_i32_0 : i32
    scf.if %2 {
      %cst = arith.constant 0.000000e+00 : f32
      %13 = vector.broadcast %cst : f32 to vector<16x128xf32>
      %c0_10 = arith.constant 0 : index
      %c0_11 = arith.constant 0 : index
      %14 = vector.load %arg5[%c0_10, %c0_11] : memref<16x128xf32, #tpu.memory_space<vmem>>, vector<16x128xf32>
      tpu.vector_store %arg5[%c0_10, %c0_11], %13 {strides = array<i32>} : memref<16x128xf32, #tpu.memory_space<vmem>>, vector<16x128xf32>,
    } else {
    }
    %c0 = arith.constant 0 : index
    %c0_1 = arith.constant 0 : index
    %3 = vector.load %arg3[%c0, %c0_1] : memref<16x128xf32, #tpu.memory_space<vmem>>, vector<16x128xf32>
    %c0_2 = arith.constant 0 : index
    %c0_3 = arith.constant 0 : index
    %4 = vector.load %arg2[%c0_2, %c0_3] : memref<16x128xf32, #tpu.memory_space<vmem>>, vector<16x128xf32>
    %5 = arith.subf %3, %4 : vector<16x128xf32>
    %6 = arith.mulf %5, %5 : vector<16x128xf32>
    %c0_4 = arith.constant 0 : index
    %c0_5 = arith.constant 0 : index
    %7 = vector.load %arg5[%c0_4, %c0_5] : memref<16x128xf32, #tpu.memory_space<vmem>>, vector<16x128xf32>
    %8 = arith.addf %7, %6 : vector<16x128xf32>
    %c0_6 = arith.constant 0 : index
    %c0_7 = arith.constant 0 : index
    %9 = vector.load %arg5[%c0_6, %c0_7] : memref<16x128xf32, #tpu.memory_space<vmem>>, vector<16x128xf32>
    tpu.vector_store %arg5[%c0_6, %c0_7], %8 {strides = array<i32>} : memref<16x128xf32, #tpu.memory_space<vmem>>, vector<16x128xf32>,
    %c0_i32_8 = arith.constant 0 : i32
    %10 = arith.cmpi eq, %arg1, %c0_i32_8 : i32
    %11 = arith.extui %10 : i1 to i32
    %c0_i32_9 = arith.constant 0 : i32
    %12 = arith.cmpi ne, %11, %c0_i32_9 : i32
    scf.if %12 {
      %c0_10 = arith.constant 0 : index
      %c0_11 = arith.constant 0 : index
      %13 = vector.load %arg5[%c0_10, %c0_11] : memref<16x128xf32, #tpu.memory_space<vmem>>, vector<16x128xf32>
      %14 = vector.shape_cast %13 : vector<16x128xf32> to vector<2x8x128xf32>
      %cst = arith.constant dense<0.000000e+00> : vector<8x128xf32>
      %15 = vector.multi_reduction <add>, %14, %cst [0] : vector<2x8x128xf32> to vector<8x128xf32>
      %cst_12 = arith.constant 4.8828125E-4 : f32
      %16 = vector.broadcast %cst_12 : f32 to vector<8x128xf32>
      %17 = arith.mulf %15, %16 : vector<8x128xf32>
      %c0_13 = arith.constant 0 : index
      %c0_14 = arith.constant 0 : index
      %c0_15 = arith.constant 0 : index
      %18 = vector.load %arg4[%c0_13, %c0_14, %c0_15] : memref<1x8x128xf32, #tpu.memory_space<vmem>>, vector<1x8x128xf32>
      %19 = vector.shape_cast %18 : vector<1x8x128xf32> to vector<8x128xf32>
      %20 = vector.shape_cast %17 : vector<8x128xf32> to vector<1x8x128xf32>
      tpu.vector_store %arg4[%c0_13, %c0_14, %c0_15], %20 {strides = array<i32>} : memref<1x8x128xf32, #tpu.memory_space<vmem>>, vector<1x8x128xf32>,
    } else {
    }
    return
  }
  func.func @transform_0(%arg0: i32, %arg1: i32) -> (i32, i32) {
    %c1_i32 = arith.constant 1 : i32
    %0 = arith.muli %arg0, %c1_i32 : i32
    %1 = arith.addi %0, %arg1 : i32
    %c0_i32 = arith.constant 0 : i32
    %2 = arith.minsi %1, %c0_i32 : i32
    %c0_i32_0 = arith.constant 0 : i32
    %c0_i32_1 = arith.constant 0 : i32
    return %2, %c0_i32_0 : i32, i32
  }
  func.func @transform_1(%arg0: i32, %arg1: i32) -> (i32, i32) {
    %c1_i32 = arith.constant 1 : i32
    %0 = arith.muli %arg0, %c1_i32 : i32
    %1 = arith.addi %0, %arg1 : i32
    %c0_i32 = arith.constant 0 : i32
    %2 = arith.minsi %1, %c0_i32 : i32
    %c0_i32_0 = arith.constant 0 : i32
    %c0_i32_1 = arith.constant 0 : i32
    return %2, %c0_i32_0 : i32, i32
  }
  func.func @transform_2(%arg0: i32, %arg1: i32) -> (i32, i32, i32) {
    %c0_i32 = arith.constant 0 : i32
    %c0_i32_0 = arith.constant 0 : i32
    %c0_i32_1 = arith.constant 0 : i32
    return %arg0, %c0_i32, %c0_i32_0 : i32, i32, i32
  }
}

</mosaic_0001>

<llo_original>
// kernel: tpu_custom_call.1
$region0: #{tpu_custom_call.1}
  #allocation0 [shape = 'u32[]', space=smem, size = 0x4, offset = 0x4, fixed_abs, tag = 'smem constant byte address 0x4 - core index']
  #allocation1 [shape = 'u32[72,128]{1,0:T(1,128)}', space=vmem, size = 0x9000, scoped, tag = 'internal scratch']
  #allocation2 [shape = 'f32[16,128]{1,0:T(8,128)}', space=vmem, size = 0x2000, scoped, tag = 'scratch operand']
  %s0 = inlined_call_operand.hbm [shape: f32[16,128], index: 0, kind: input, shape index: {}]
  %s1 = inlined_call_operand.hbm [shape: f32[16,128], index: 1, kind: input, shape index: {}]
  %s2 = inlined_call_operand.hbm [shape: f32[1,8,128], index: 2, kind: output, shape index: {}]
  %s3 = sld [smem:[#allocation0]]
  $region34: #{tpu_custom_call.1} parent=0
    _
  %s5 = ssub.s32 1, %s3
  %s6 = scalar_select 0, %s5, %s3
  $region1: #{tpu_custom_call.1} parent=0
    #allocation3 [shape = 'u8[8192]{0}', space=vmem, size = 0x2000, scoped, tag = 'input window, operand 0, single buffered']
    #allocation4 [shape = 's32[1]{0}', space=sflag, size = 0x4, scoped, tag = 'scoped memory for tpu_custom_call.1']
    #allocation5 [shape = 's32[1]{0}', space=sflag, size = 0x4, scoped, tag = 'scoped memory for tpu_custom_call.1']
    #allocation6 [shape = 'u8[8192]{0}', space=vmem, size = 0x2000, scoped, tag = 'input window, operand 1, single buffered']
    #allocation7 [shape = 's32[1]{0}', space=sflag, size = 0x4, scoped, tag = 'scoped memory for tpu_custom_call.1']
    #allocation8 [shape = 'u8[4096]{0}', space=vmem, size = 0x1000, scoped, tag = 'output window, operand 0, single buffered']
    %7 = vsyncpa [#allocation4], 0
    %8 = vsyncpa [#allocation7], 0
    %9 = vsyncpa [#allocation5], 0
    // Predicated region
    $region2: #{tpu_custom_call.1} parent=1 // pred_check
      _
    $region3: #{tpu_custom_call.1} parent=1 // pred_check_branch
      %11 = sbr.rel (0) target = $region5
    $region4: #{tpu_custom_call.1} parent=1 // pred_region
      %s12 = sadd.s32 0, 0
      %p13 = scmp.lt.s32.totalorder %s12, 0
      %s14 = scalar_select %p13, %s12, 0
      %s15 = smul.u32 2, %s14
      %17 = vsyncadd [#allocation4], 0
      %s18 = smul.addr %s15, 8
      %s19 = scalar_lea.hbm %s0, %s18
      %s20 = sshll.u32 %s19, 4
      %s21 = int_to_ptr.hbm [resolvable:$true] %s20
      %s22 = sshll.u32 [#allocation3], 4
      %s23 = int_to_ptr.vmem [resolvable:$true] %s22
      %28 = dma.hbm_to_vmem [thread:$0]  %s21, 256, %s23, [#allocation4], 128, 128, 8
    $region5: #{tpu_custom_call.1} parent=1 // pred_fallthru
      _
    // Predicated region
    $region6: #{tpu_custom_call.1} parent=1 // pred_check
      _
    $region7: #{tpu_custom_call.1} parent=1 // pred_check_branch
      %30 = sbr.rel (0) target = $region9
    $region8: #{tpu_custom_call.1} parent=1 // pred_region
      %s31 = sadd.s32 0, 0
      %p32 = scmp.lt.s32.totalorder %s31, 0
      %s33 = scalar_select %p32, %s31, 0
      %s34 = smul.u32 2, %s33
      %36 = vsyncadd [#allocation7], 0
      %s37 = smul.addr %s34, 8
      %s38 = scalar_lea.hbm %s1, %s37
      %s39 = sshll.u32 %s38, 4
      %s40 = int_to_ptr.hbm [resolvable:$true] %s39
      %s41 = sshll.u32 [#allocation6], 4
      %s42 = int_to_ptr.vmem [resolvable:$true] %s41
      %47 = dma.hbm_to_vmem [thread:$0]  %s40, 256, %s42, [#allocation7], 128, 128, 8
    $region9: #{tpu_custom_call.1} parent=1 // pred_fallthru
      _
    // Predicated region
    $region10: #{tpu_custom_call.1} parent=1 // pred_check
      _
    $region11: #{tpu_custom_call.1} parent=1 // pred_check_branch
      %49 = sbr.rel (0) target = $region13
    $region12: #{tpu_custom_call.1} parent=1 // pred_region
      %51 = dma.done [#allocation4], 256
    $region13: #{tpu_custom_call.1} parent=1 // pred_fallthru
      _
    // Predicated region
    $region14: #{tpu_custom_call.1} parent=1 // pred_check
      _
    $region15: #{tpu_custom_call.1} parent=1 // pred_check_branch
      %53 = sbr.rel (0) target = $region17
    $region16: #{tpu_custom_call.1} parent=1 // pred_region
      %55 = dma.done [#allocation7], 256
    $region17: #{tpu_custom_call.1} parent=1 // pred_fallthru
      _
    %s56 = sadd.s32 0, 0
    %p57 = scmp.lt.s32.totalorder %s56, 0
    %s58 = scalar_select %p57, %s56, 0
    %s59 = smul.u32 2, %s58
    %s60 = sadd.s32 0, 0
    %p61 = scmp.lt.s32.totalorder %s60, 0
    %s62 = scalar_select %p61, %s60, 0
    %s63 = smul.u32 2, %s62
    %p64 = scmp.eq.s32.totalorder 0, 0
    // Predicated region
    $region18: #{tpu_custom_call.1} parent=1 // pred_check
      %p65 = pneg %p64
    $region19: #{tpu_custom_call.1} parent=1 // pred_check_branch
      %67 = sbr.rel (%p65) target = $region21
    $region20: #{tpu_custom_call.1} parent=1 // pred_region
      %68 = vst [vmem:[#allocation2] sm:$0xff] 0.0
      %69 = vst [vmem:[#allocation2 + $0x8] sm:$0xff] 0.0
    $region21: #{tpu_custom_call.1} parent=1 // pred_fallthru
      _
    %v70 = vld [vmem:[#allocation6] sm:$0xff]
    %v71 = vld [vmem:[#allocation6 + $0x8] sm:$0xff]
    %v72 = vld [vmem:[#allocation3] sm:$0xff]
    %v73 = vld [vmem:[#allocation3 + $0x8] sm:$0xff]
    %v74 = vsub.f32 %v70, %v72
    %v75 = vsub.f32 %v71, %v73
    %v76 = vmul.f32 %v74, %v74
    %v77 = vmul.f32 %v75, %v75
    %v78 = vld [vmem:[#allocation2] sm:$0xff]
    %v79 = vld [vmem:[#allocation2 + $0x8] sm:$0xff]
    %v80 = vadd.f32 %v78, %v76
    %v81 = vadd.f32 %v79, %v77
    %82 = vst [vmem:[#allocation2] sm:$0xff] %v80
    %83 = vst [vmem:[#allocation2 + $0x8] sm:$0xff] %v81
    // Predicated region
    $region22: #{tpu_custom_call.1} parent=1 // pred_check
      %p84 = pneg %p64
    $region23: #{tpu_custom_call.1} parent=1 // pred_check_branch
      %86 = sbr.rel (%p84) target = $region25
    $region24: #{tpu_custom_call.1} parent=1 // pred_region
      %v87 = vld [vmem:[#allocation2] sm:$0xff]
      %v88 = vld [vmem:[#allocation2 + $0x8] sm:$0xff]
      %v89 = vadd.f32 %v87, %v88
      %v90 = vmul.f32 %v89, 0.00048828125
      %91 = vst [vmem:[#allocation8] sm:$0xff] %v90
    $region25: #{tpu_custom_call.1} parent=1 // pred_fallthru
      _
    // Predicated region
    $region26: #{tpu_custom_call.1} parent=1 // pred_check
      _
    $region27: #{tpu_custom_call.1} parent=1 // pred_check_branch
      %93 = sbr.rel (0) target = $region29
    $region28: #{tpu_custom_call.1} parent=1 // pred_region
      %95 = vsyncadd [#allocation5], 0
      %s97 = sshll.u32 [#allocation8], 4
      %s98 = int_to_ptr.vmem [resolvable:$true] %s97
      %s99 = sshll.u32 %s2, 4
      %s100 = int_to_ptr.hbm [resolvable:$true] %s99
      %102 = dma.vmem_to_hbm [thread:$0]  %s98, 128, %s100, [#allocation5]
    $region29: #{tpu_custom_call.1} parent=1 // pred_fallthru
      _
    // Predicated region
    $region30: #{tpu_custom_call.1} parent=1 // pred_check
      _
    $region31: #{tpu_custom_call.1} parent=1 // pred_check_branch
      %104 = sbr.rel (0) target = $region33
    $region32: #{tpu_custom_call.1} parent=1 // pred_region
      %106 = dma.done [#allocation5], 128
    $region33: #{tpu_custom_call.1} parent=1 // pred_fallthru
      _
    %107 = vsyncpa [#allocation4], 1
    %108 = vsyncpa [#allocation7], 1
    %109 = vsyncpa [#allocation5], 1

</llo_original>
